<compile_context>
chip_gen: v6e
topology: v6e:2x2x1
jax: 0.10.0
libtpu: 0.0.40
codegen_flags: <defaults>
</compile_context>

<pallas_src>
import math

import jax
import jax.numpy as jnp
from jax.experimental import pallas as pl
from jax.experimental.pallas import tpu as pltpu


_F32_TINY = float(jnp.finfo(jnp.float32).tiny)   # smallest positive normal f32


def _make_pooler_kernel(k_max: int, boost_percent: float, has_boost: bool):
    """Per-tile kernel over a (1, C, THW) block (C on sublanes, HW on lanes)."""

    def _compute(x, b, out_ref, new_boost_ref):
        # 1) additive boosting (skipped entirely on the zero-boost fast path)
        inhibited = x + b if has_boost else x

        # 2) sparse self-inhibition: empty COO tensor on first forward -> identity.

        # 3) k-winners-positive along the channel (sublane) axis.
        #    Read-only peel: `cur` is strictly decreasing, so filtering with
        #    `inhibited < cur` equals the cumulative `== cur` masking of the
        #    mutate-and-remax loop, but never rewrites the tile (no vst in the
        #    inner loop).  Ties with the running max peel together (same as
        #    argsort top-k only for tie-free float inputs).
        cur = jnp.max(inhibited, axis=1, keepdims=True)        # (1, 1, THW)
        col_max = cur                                          # reused in step 4
        for _ in range(k_max - 1):
            cur = jnp.max(jnp.where(inhibited < cur, inhibited, -jnp.inf),
                          axis=1, keepdims=True)

        # positivity folded into the threshold (thr > 0 always)
        thr = jnp.maximum(cur, jnp.float32(_F32_TINY))
        fired = inhibited >= thr
        out = jnp.where(fired, inhibited, 0.0)
        out_ref[...] = out

        # 4) PercentClosenessBoosting update, then reset boost of fired units:
        #    nb = b + p*(col_max - inhibited)/(|col_max| + eps)
        #       = b + base - scale*inhibited, with per-lane rows scale/base.
        inv = pl.reciprocal(jnp.abs(col_max) + jnp.float32(1e-12),
                            approx=True)                        # EUP slot
        scale = jnp.float32(boost_percent) * inv                # (1, 1, THW)
        base = scale * col_max                                  # (1, 1, THW)
        nb = base - scale * inhibited
        if has_boost:
            nb = b + nb
        new_boost_ref[...] = jnp.where(fired, 0.0, nb)

    if has_boost:
        def kernel(x_ref, boost_ref, out_ref, new_boost_ref):
            _compute(x_ref[...], boost_ref[...], out_ref, new_boost_ref)
    else:
        def kernel(x_ref, out_ref, new_boost_ref):
            _compute(x_ref[...], None, out_ref, new_boost_ref)
    return kernel


def _vmem_budget_bytes() -> int:
    """Half of physical VMEM: ~64 MiB on 128-MiB parts (v5e/v6e), ~32 MiB on
    v7x (64 MiB per TensorCore).  Conservative fallback if the query fails."""
    try:
        cap = int(pltpu.get_tpu_info().vmem_capacity_bytes)
    except Exception:
        cap = 64 << 20
    return max(16 << 20, cap // 2)


def _pick_spatial_tile(hw: int, c: int, batch: int, n_live: int,
                       vmem_budget_bytes: int, itemsize: int = 4) -> int:
    """Largest lane-dense (multiple-of-128) spatial tile that keeps ~n_live
    block-sized live arrays under the VMEM budget, shrunk so the grid has at
    least 4 steps when possible (v7x megacore).  The tile need not divide hw
    (the grid uses cdiv; padded lanes of the last block are discarded)."""
    if hw <= 128:
        # TODO(synk): hw < 128 under-fills the lane axis (masked vst); a
        # (C, B*HW) relayout would fix it but costs a transpose per call.
        return hw
    hw_ceil = ((hw + 127) // 128) * 128
    max_thw = max(128, (vmem_budget_bytes // (n_live * c * itemsize)) // 128 * 128)
    thw = min(max_thw, hw_ceil)
    # megacore: keep >= 4 grid steps whenever the problem allows it
    while thw > 128 and batch * ((hw + thw - 1) // thw) < 4:
        thw = max(128, (thw // 2) // 128 * 128)
    return thw


def sparse_variational_pooler(x,
                              boost_tensor=None,
                              sparsity=(0.002, 0.02),
                              boost_percent=1e-9,
                              donate_boost=False):
    """JAX/Pallas equivalent of SparseVariationalPooler.forward.

    x: (B, C, H, W) float32 (NCHW, like the PyTorch module).
    Returns (pooled, new_boost_tensor), both (B, C, H, W).
    """
    B, C, H, W = x.shape
    HW = H * W
    x3 = x.reshape(B, C, HW)                 # free: merges trailing dims only

    max_sparsity = float(sparsity[1])
    k_max = max(1, int(math.ceil(max_sparsity * C)))

    has_boost = boost_tensor is not None
    n_live = 11 if has_boost else 9          # double-buffered blocks + temps
    budget = _vmem_budget_bytes()
    thw = _pick_spatial_tile(HW, C, B, n_live, budget)
    grid = (B, pl.cdiv(HW, thw))

    blk = pl.BlockSpec((1, C, thw), lambda bi, ti: (bi, 0, ti))
    out_shape = (jax.ShapeDtypeStruct((B, C, HW), x.dtype),
                 jax.ShapeDtypeStruct((B, C, HW), x.dtype))
    compiler_params = pltpu.CompilerParams(
        dimension_semantics=("parallel", "parallel"),
        vmem_limit_bytes=budget)

    if has_boost:
        b3 = boost_tensor.reshape(B, C, HW)
        out3, nb3 = pl.pallas_call(
            _make_pooler_kernel(k_max, float(boost_percent), True),
            out_shape=out_shape,
            grid=grid,
            in_specs=[blk, blk],
            out_specs=(blk, blk),
            input_output_aliases=({1: 1} if donate_boost else {}),
            compiler_params=compiler_params,
        )(x3, b3)
    else:
        # first forward: the module creates boost_tensor = zeros_like(x); skip
        # streaming a known-zero array from HBM (1 of 4 full-array passes).
        out3, nb3 = pl.pallas_call(
            _make_pooler_kernel(k_max, float(boost_percent), False),
            out_shape=out_shape,
            grid=grid,
            in_specs=[blk],
            out_specs=(blk, blk),
            compiler_params=compiler_params,
        )(x3)

    return out3.reshape(B, C, H, W), nb3.reshape(B, C, H, W)


if __name__ == "__main__":
    key = jax.random.PRNGKey(0)
    B, C, H, W = 2, 64, 16, 16               # small NCHW input
    x = jax.random.normal(key, (B, C, H, W), dtype=jnp.float32)

    # first forward: zero-boost fast path
    pooled, new_boost = sparse_variational_pooler(x)
    jax.block_until_ready((pooled, new_boost))

    # sanity: per spatial location at most k_max channels fire (random floats
    # are tie-free), fired values pass through unchanged (boost starts at 0),
    # and fired units have their boost reset to zero.
    k_max = max(1, int(math.ceil(0.02 * C)))
    active_per_loc = (pooled > 0).sum(axis=1)
    assert pooled.shape == x.shape and new_boost.shape == x.shape
    assert int(active_per_loc.max()) <= k_max
    assert bool(jnp.all((pooled == 0) | (pooled == x)))
    assert bool(jnp.all(jnp.where(pooled > 0, new_boost == 0, True)))

    # second forward: exercise the boost-input kernel variant with the boost
    # parameter produced by the first call.
    pooled2, new_boost2 = sparse_variational_pooler(x, boost_tensor=new_boost)
    jax.block_until_ready((pooled2, new_boost2))
    assert pooled2.shape == x.shape and new_boost2.shape == x.shape
    assert bool(jnp.all(jnp.isfinite(pooled2)))
    assert bool(jnp.all(jnp.isfinite(new_boost2)))

    print("KERNEL_OK")
</pallas_src>

<mosaic_0001>
module attributes {stable_mosaic.version = 11 : i64} {
  func.func @kernel(%arg0: i32, %arg1: i32, %arg2: memref<1x64x128xf32, #tpu.memory_space<vmem>>, %arg3: memref<1x64x128xf32, #tpu.memory_space<vmem>>, %arg4: memref<1x64x128xf32, #tpu.memory_space<vmem>>) attributes {dimension_semantics = [#tpu.dimension_semantics<parallel>, #tpu.dimension_semantics<parallel>], iteration_bounds = array<i64: 2, 2>, scalar_prefetch = 0 : i64, scratch_operands = 0 : i64, tpu.core_type = #tpu.core_type<tc>, window_params = [{transform_indices = @transform_0, window_bounds = array<i64: 1, 64, 128>}, {transform_indices = @transform_1, window_bounds = array<i64: 1, 64, 128>}, {transform_indices = @transform_2, window_bounds = array<i64: 1, 64, 128>}]} {
    %c0 = arith.constant 0 : index
    %c0_0 = arith.constant 0 : index
    %c0_1 = arith.constant 0 : index
    %0 = vector.load %arg2[%c0, %c0_0, %c0_1] : memref<1x64x128xf32, #tpu.memory_space<vmem>>, vector<1x64x128xf32>
    %cst = arith.constant dense<0xFF800000> : vector<1x128xf32>
    %1 = vector.multi_reduction <maximumf>, %0, %cst [1] : vector<1x64x128xf32> to vector<1x128xf32>
    %2 = vector.shape_cast %1 : vector<1x128xf32> to vector<1x1x128xf32>
    %3 = vector.broadcast %2 : vector<1x1x128xf32> to vector<1x64x128xf32>
    %4 = arith.cmpf olt, %0, %3 : vector<1x64x128xf32>
    %cst_2 = arith.constant 0xFF800000 : f32
    %5 = vector.broadcast %cst_2 : f32 to vector<1x64x128xf32>
    %6 = arith.select %4, %0, %5 : vector<1x64x128xi1>, vector<1x64x128xf32>
    %cst_3 = arith.constant dense<0xFF800000> : vector<1x128xf32>
    %7 = vector.multi_reduction <maximumf>, %6, %cst_3 [1] : vector<1x64x128xf32> to vector<1x128xf32>
    %8 = vector.shape_cast %7 : vector<1x128xf32> to vector<1x1x128xf32>
    %cst_4 = arith.constant 1.17549435E-38 : f32
    %9 = vector.broadcast %cst_4 : f32 to vector<1x1x128xf32>
    %10 = arith.maximumf %8, %9 : vector<1x1x128xf32>
    %11 = vector.broadcast %10 : vector<1x1x128xf32> to vector<1x64x128xf32>
    %12 = arith.cmpf oge, %0, %11 : vector<1x64x128xf32>
    %cst_5 = arith.constant 0.000000e+00 : f32
    %13 = vector.broadcast %cst_5 : f32 to vector<1x64x128xf32>
    %14 = arith.select %12, %0, %13 : vector<1x64x128xi1>, vector<1x64x128xf32>
    %c0_6 = arith.constant 0 : index
    %c0_7 = arith.constant 0 : index
    %c0_8 = arith.constant 0 : index
    %15 = vector.load %arg3[%c0_6, %c0_7, %c0_8] : memref<1x64x128xf32, #tpu.memory_space<vmem>>, vector<1x64x128xf32>
    tpu.vector_store %arg3[%c0_6, %c0_7, %c0_8], %14 {strides = array<i32>} : memref<1x64x128xf32, #tpu.memory_space<vmem>>, vector<1x64x128xf32>,
    %16 = math.absf %2 : vector<1x1x128xf32>
    %cst_9 = arith.constant 9.99999996E-13 : f32
    %17 = vector.broadcast %cst_9 : f32 to vector<1x1x128xf32>
    %18 = arith.addf %16, %17 : vector<1x1x128xf32>
    %19 = tpu.reciprocal %18 {approx = true} : vector<1x1x128xf32> -> vector<1x1x128xf32>
    %cst_10 = arith.constant 9.99999971E-10 : f32
    %20 = vector.broadcast %cst_10 : f32 to vector<1x1x128xf32>
    %21 = arith.mulf %20, %19 : vector<1x1x128xf32>
    %22 = arith.mulf %21, %2 : vector<1x1x128xf32>
    %23 = vector.broadcast %21 : vector<1x1x128xf32> to vector<1x64x128xf32>
    %24 = arith.mulf %23, %0 : vector<1x64x128xf32>
    %25 = vector.broadcast %22 : vector<1x1x128xf32> to vector<1x64x128xf32>
    %26 = arith.subf %25, %24 : vector<1x64x128xf32>
    %cst_11 = arith.constant 0.000000e+00 : f32
    %27 = vector.broadcast %cst_11 : f32 to vector<1x64x128xf32>
    %28 = arith.select %12, %27, %26 : vector<1x64x128xi1>, vector<1x64x128xf32>
    %c0_12 = arith.constant 0 : index
    %c0_13 = arith.constant 0 : index
    %c0_14 = arith.constant 0 : index
    %29 = vector.load %arg4[%c0_12, %c0_13, %c0_14] : memref<1x64x128xf32, #tpu.memory_space<vmem>>, vector<1x64x128xf32>
    tpu.vector_store %arg4[%c0_12, %c0_13, %c0_14], %28 {strides = array<i32>} : memref<1x64x128xf32, #tpu.memory_space<vmem>>, vector<1x64x128xf32>,
    return
  }
  func.func @transform_0(%arg0: i32, %arg1: i32) -> (i32, i32, i32) {
    %c0_i32 = arith.constant 0 : i32
    %c0_i32_0 = arith.constant 0 : i32
    return %arg0, %c0_i32, %arg1 : i32, i32, i32
  }
  func.func @transform_1(%arg0: i32, %arg1: i32) -> (i32, i32, i32) {
    %c0_i32 = arith.constant 0 : i32
    %c0_i32_0 = arith.constant 0 : i32
    return %arg0, %c0_i32, %arg1 : i32, i32, i32
  }
  func.func @transform_2(%arg0: i32, %arg1: i32) -> (i32, i32, i32) {
    %c0_i32 = arith.constant 0 : i32
    %c0_i32_0 = arith.constant 0 : i32
    return %arg0, %c0_i32, %arg1 : i32, i32, i32
  }
}

</mosaic_0001>

<llo_original>
// kernel: tpu_custom_call.1
$region0: #{tpu_custom_call.1}
  #allocation0 [shape = 'u32[]', space=smem, size = 0x4, offset = 0x4, fixed_abs, tag = 'smem constant byte address 0x4 - core index']
  #allocation1 [shape = 'u32[144,128]{1,0:T(1,128)}', space=vmem, size = 0x12000, scoped, tag = 'internal scratch']
  %s0 = inlined_call_operand.hbm [shape: f32[2,64,256], index: 0, kind: input, shape index: {}]
  %s1 = inlined_call_operand.hbm [shape: f32[2,64,256], index: 1, kind: output, shape index: {0}]
  %s2 = inlined_call_operand.hbm [shape: f32[2,64,256], index: 2, kind: output, shape index: {1}]
  %3 = xla_tuple %s1, %s2
  %s4 = sld [smem:[#allocation0]]
  $region49: #{tpu_custom_call.1} parent=0
    _
  %s6 = ssub.s32 1, %s4
  %s7 = scalar_select 0, %s6, %s4
  $region1: #{tpu_custom_call.1} parent=0
    #allocation2 [shape = 'u8[65536]{0}', space=vmem, size = 0x10000, scoped, tag = 'input window, operand 0']
    #allocation3 [shape = 's32[2]{0}', space=sflag, size = 0x8, scoped, tag = 'scoped memory for tpu_custom_call.1']
    #allocation4 [shape = 's32[2]{0}', space=sflag, size = 0x8, scoped, tag = 'scoped memory for tpu_custom_call.1']
    #allocation5 [shape = 'u8[65536]{0}', space=vmem, size = 0x10000, scoped, tag = 'output window, operand 0']
    #allocation6 [shape = 'u8[65536]{0}', space=vmem, size = 0x10000, scoped, tag = 'output window, operand 1']
    #allocation7 [shape = 's32[2]{0}', space=sflag, size = 0x8, scoped, tag = 'scoped memory for tpu_custom_call.1']
    %8 = vsyncpa [#allocation3], 0
    %s9 = scalar_lea.sflag [#allocation3], 1
    %10 = vsyncpa %s9, 0
    %11 = vsyncpa [#allocation4], 0
    %s12 = scalar_lea.sflag [#allocation4], 1
    %13 = vsyncpa %s12, 0
    %14 = vsyncpa [#allocation7], 0
    %s15 = scalar_lea.sflag [#allocation7], 1
    %16 = vsyncpa %s15, 0
    loop: start=0, step=1, limit=6
    $region2: #{tpu_custom_call.1} parent=1 // loop_pre_header
      _
    $region3: #{tpu_custom_call.1} parent=1 // loop_header
      %s18 = sphi 0, %s22
      %p19 = scmp.ge.s32.totalorder %s18, 6
      %s25 = sphi 0, %s37
      %s26 = sphi 0, %s33
      %s27 = sphi 0, %s25
      %s28 = sphi 0, %s26
      %s29 = sphi 0, %s27
      %s30 = sphi 0, %s28
      %s42 = sphi 0, %s44
      %s45 = sphi 0, %s42
      %s46 = sphi 0, %s45
      %s62 = sphi 0, %s46
      %s70 = sphi 0, %s72
      %s73 = sphi 0, %s70
      %s74 = sphi 0, %s73
      %s90 = sphi 0, %s74
      %s98 = sphi 0, %s100
      %s101 = sphi 0, %s98
      %s102 = sphi 0, %s101
      %s118 = sphi 0, %s102
    $region4: #{tpu_custom_call.1} parent=1 // loop_header_branch
      %21 = sbr.rel (%p19) target = $region8
    $region5: #{tpu_custom_call.1} parent=1 // loop_body
      %s23 = ssub.s32 %s18, 1
      %s24 = ssub.s32 %s18, 2
      %s31 = sadd.s32 1, %s26
      %p32 = scmp.ge.s32.totalorder %s31, 2
      %s33 = scalar_select %p32, 0, %s31
      %s34 = sadd.s32 1, %s25
      %s35 = scalar_select %p32, %s34, %s25
      %p36 = scmp.ge.s32.totalorder %s35, 2
      %s37 = scalar_select %p36, 0, %s35
      %s38 = ssub.s32 %s25, %s37
      %s39 = ssub.s32 %s26, %s33
      %s40 = sor.u32 %s38, %s39
      %p41 = scmp.eq.s32.totalorder %s40, 0
      %s43 = sadd.s32 %s42, 1
      %s44 = scalar_select %p41, %s42, %s43
      %p47 = pneg %p41
      %p48 = scmp.eq.s32.totalorder %s18, 3
      %p49 = por %p47, %p48
      %p50 = scmp.ne.s32.totalorder %s42, %s45
      %p51 = scmp.eq.s32.totalorder %s18, 0
      %p52 = por %p50, %p51
      %p53 = scmp.ne.s32.totalorder %s42, %s45
      %p54 = scmp.eq.s32.totalorder %s23, 3
      %p55 = por %p53, %p54
      %p56 = scmp.ne.s32.totalorder %s45, %s46
      %p57 = scmp.eq.s32.totalorder %s23, 0
      %p58 = por %p56, %p57
      %p59 = scmp.ne.s32.totalorder %s45, %s46
      %p60 = scmp.eq.s32.totalorder %s24, 3
      %p61 = por %p59, %p60
      %p63 = scmp.ne.s32.totalorder %s46, %s62
      %p64 = scmp.eq.s32.totalorder %s24, 0
      %p65 = por %p63, %p64
      %s66 = ssub.s32 %s25, %s37
      %s67 = ssub.s32 %s26, %s33
      %s68 = sor.u32 %s66, %s67
      %p69 = scmp.eq.s32.totalorder %s68, 0
      %s71 = sadd.s32 %s70, 1
      %s72 = scalar_select %p69, %s70, %s71
      %p75 = pneg %p69
      %p76 = scmp.eq.s32.totalorder %s18, 3
      %p77 = por %p75, %p76
      %p78 = scmp.ne.s32.totalorder %s70, %s73
      %p79 = scmp.eq.s32.totalorder %s18, 0
      %p80 = por %p78, %p79
      %p81 = scmp.ne.s32.totalorder %s70, %s73
      %p82 = scmp.eq.s32.totalorder %s23, 3
      %p83 = por %p81, %p82
      %p84 = scmp.ne.s32.totalorder %s73, %s74
      %p85 = scmp.eq.s32.totalorder %s23, 0
      %p86 = por %p84, %p85
      %p87 = scmp.ne.s32.totalorder %s73, %s74
      %p88 = scmp.eq.s32.totalorder %s24, 3
      %p89 = por %p87, %p88
      %p91 = scmp.ne.s32.totalorder %s74, %s90
      %p92 = scmp.eq.s32.totalorder %s24, 0
      %p93 = por %p91, %p92
      %s94 = ssub.s32 %s25, %s37
      %s95 = ssub.s32 %s26, %s33
      %s96 = sor.u32 %s94, %s95
      %p97 = scmp.eq.s32.totalorder %s96, 0
      %s99 = sadd.s32 %s98, 1
      %s100 = scalar_select %p97, %s98, %s99
      %p103 = pneg %p97
      %p104 = scmp.eq.s32.totalorder %s18, 3
      %p105 = por %p103, %p104
      %p106 = scmp.ne.s32.totalorder %s98, %s101
      %p107 = scmp.eq.s32.totalorder %s18, 0
      %p108 = por %p106, %p107
      %p109 = scmp.ne.s32.totalorder %s98, %s101
      %p110 = scmp.eq.s32.totalorder %s23, 3
      %p111 = por %p109, %p110
      %p112 = scmp.ne.s32.totalorder %s101, %s102
      %p113 = scmp.eq.s32.totalorder %s23, 0
      %p114 = por %p112, %p113
      %p115 = scmp.ne.s32.totalorder %s101, %s102
      %p116 = scmp.eq.s32.totalorder %s24, 3
      %p117 = por %p115, %p116
      %p119 = scmp.ne.s32.totalorder %s102, %s118
      %p120 = scmp.eq.s32.totalorder %s24, 0
      %p121 = por %p119, %p120
      %p122 = scmp.le.s32.totalorder 1, %s18
      %p123 = scmp.lt.s32.totalorder %s18, 5
      %p124 = pnand %p122, %p123
      %p125 = pneg %p124
      // Predicated region
      $region9: #{tpu_custom_call.1} parent=5 // pred_check
        _
      $region10: #{tpu_custom_call.1} parent=5 // pred_check_branch
        %127 = sbr.rel (%p124) target = $region12
      $region11: #{tpu_custom_call.1} parent=5 // pred_region
        %s128 = ssub.s32 %s18, 1
      $region12: #{tpu_custom_call.1} parent=5 // pred_fallthru
        _
      %p129 = scmp.lt.s32.totalorder %s18, 4
      // Predicated region
      $region13: #{tpu_custom_call.1} parent=5 // pred_check
        %p130 = pneg %p129
      $region14: #{tpu_custom_call.1} parent=5 // pred_check_branch
        %132 = sbr.rel (%p130) target = $region16
      $region15: #{tpu_custom_call.1} parent=5 // pred_region
        // Predicated region
        $region17: #{tpu_custom_call.1} parent=15 // pred_check
          %p133 = pneg %p52
        $region18: #{tpu_custom_call.1} parent=15 // pred_check_branch
          %135 = sbr.rel (%p133) target = $region20
        $region19: #{tpu_custom_call.1} parent=15 // pred_region
          %s136 = sand.u32 %s42, 1
          %s137 = scalar_lea.sflag [#allocation3], %s136
          %s138 = sand.u32 %s42, 1
          %s139 = smul.addr %s138, 64
          %s140 = scalar_lea.vmem [#allocation2], %s139
          %s142 = ssub.s32 1024, 1024
          %143 = vsyncadd %s137, %s142
          %s144 = smul.addr %s25, 16
          %s145 = sadd.s32 %s26, %s144
          %s146 = smul.addr %s145, 128
          %s147 = scalar_lea.hbm %s0, %s146
          %s148 = sshll.u32 %s140, 4
          %s149 = int_to_ptr.vmem [resolvable:$true] %s148
          %154 = dma.hbm_to_vmem [thread:$0]  %s147, 1024, %s149, %s137, 256, 128, 8
        $region20: #{tpu_custom_call.1} parent=15 // pred_fallthru
          _
      $region16: #{tpu_custom_call.1} parent=5 // pred_fallthru
        _
      %p155 = scmp.le.s32.totalorder 1, %s18
      %p156 = scmp.lt.s32.totalorder %s18, 5
      %p157 = pnand %p155, %p156
      %p158 = pneg %p157
      // Predicated region
      $region21: #{tpu_custom_call.1} parent=5 // pred_check
        _
      $region22: #{tpu_custom_call.1} parent=5 // pred_check_branch
        %160 = sbr.rel (%p157) target = $region24
      $region23: #{tpu_custom_call.1} parent=5 // pred_region
        %s161 = ssub.s32 %s18, 1
        %s162 = sand.u32 %s45, 1
        %s163 = scalar_lea.sflag [#allocation3], %s162
        %s164 = sand.u32 %s45, 1
        %s165 = smul.addr %s164, 64
        %s166 = scalar_lea.vmem [#allocation2], %s165
        // Predicated region
        $region25: #{tpu_custom_call.1} parent=23 // pred_check
          %p167 = pneg %p58
        $region26: #{tpu_custom_call.1} parent=23 // pred_check_branch
          %169 = sbr.rel (%p167) target = $region28
        $region27: #{tpu_custom_call.1} parent=23 // pred_region
          %170 = dma.done %s163, 1024
        $region28: #{tpu_custom_call.1} parent=23 // pred_fallthru
          _
        %s171 = sand.u32 %s45, 1
        %s172 = scalar_lea.sflag [#allocation3], %s171
        %s173 = sand.u32 %s45, 1
        %s174 = smul.addr %s173, 64
        %s175 = scalar_lea.vmem [#allocation2], %s174
        %p176 = pneg %p58
        %p177 = pneg %p55
        %p178 = pneg %p86
        %p179 = pneg %p83
        %s180 = sand.u32 %s73, 1
        %s181 = scalar_lea.sflag [#allocation4], %s180
        %s182 = sand.u32 %s73, 1
        %s183 = smul.addr %s182, 64
        %s184 = scalar_lea.vmem [#allocation5], %s183
        %p185 = pneg %p114
        %p186 = pneg %p111
        %s187 = sand.u32 %s101, 1
        %s188 = scalar_lea.sflag [#allocation7], %s187
        %s189 = sand.u32 %s101, 1
        %s190 = smul.addr %s189, 64
        %s191 = scalar_lea.vmem [#allocation6], %s190
        %v192 = vld [vmem:[%s166] sm:$0xff]
        %v193 = vld [vmem:[%s166 + $0x8] sm:$0xff]
        %v194 = vld [vmem:[%s166 + $0x10] sm:$0xff]
        %v195 = vld [vmem:[%s166 + $0x18] sm:$0xff]
        %v196 = vld [vmem:[%s166 + $0x20] sm:$0xff]
        %v197 = vld [vmem:[%s166 + $0x28] sm:$0xff]
        %v198 = vld [vmem:[%s166 + $0x30] sm:$0xff]
        %v199 = vld [vmem:[%s166 + $0x38] sm:$0xff]
        %v200 = vmax.f32 %v192, %v196
        %v201 = vmax.f32 %v193, %v197
        %v202 = vmax.f32 %v194, %v198
        %v203 = vmax.f32 %v195, %v199
        %v204 = vmax.f32 %v200, %v201
        %v205 = vmax.f32 %v202, %v203
        %v206 = vmax.f32 %v204, %v205
        %v207 = vrot.slane %v206, 4
        %v208 = vmax.f32 %v206, %v207
        %v209 = vrot.slane %v208, 2
        %v210 = vmax.f32 %v208, %v209
        %v211 = vrot.slane %v210, 1
        %v212 = vmax.f32 %v210, %v211
        %vm213 = vcmp.lt.f32.partialorder %v192, %v212
        %vm214 = vcmp.lt.f32.partialorder %v193, %v212
        %vm215 = vcmp.lt.f32.partialorder %v194, %v212
        %vm216 = vcmp.lt.f32.partialorder %v195, %v212
        %vm217 = vcmp.lt.f32.partialorder %v196, %v212
        %vm218 = vcmp.lt.f32.partialorder %v197, %v212
        %vm219 = vcmp.lt.f32.partialorder %v198, %v212
        %vm220 = vcmp.lt.f32.partialorder %v199, %v212
        %v221 = vsel %vm213, %v192, -inf
        %v222 = vsel %vm214, %v193, -inf
        %v223 = vsel %vm215, %v194, -inf
        %v224 = vsel %vm216, %v195, -inf
        %v225 = vsel %vm217, %v196, -inf
        %v226 = vsel %vm218, %v197, -inf
        %v227 = vsel %vm219, %v198, -inf
        %v228 = vsel %vm220, %v199, -inf
        %v229 = vmax.f32 %v221, %v225
        %v230 = vmax.f32 %v222, %v226
        %v231 = vmax.f32 %v223, %v227
        %v232 = vmax.f32 %v224, %v228
        %v233 = vmax.f32 %v229, %v230
        %v234 = vmax.f32 %v231, %v232
        %v235 = vmax.f32 %v233, %v234
        %v236 = vrot.slane %v235, 4
        %v237 = vmax.f32 %v235, %v236
        %v238 = vrot.slane %v237, 2
        %v239 = vmax.f32 %v237, %v238
        %v240 = vrot.slane %v239, 1
        %v241 = vmax.f32 %v239, %v240
        %v242 = vmax.f32 %v241, 1.1754944e-38
        %vm243 = vcmp.ge.f32.partialorder %v192, %v242
        %vm244 = vcmp.ge.f32.partialorder %v193, %v242
        %vm245 = vcmp.ge.f32.partialorder %v194, %v242
        %vm246 = vcmp.ge.f32.partialorder %v195, %v242
        %vm247 = vcmp.ge.f32.partialorder %v196, %v242
        %vm248 = vcmp.ge.f32.partialorder %v197, %v242
        %vm249 = vcmp.ge.f32.partialorder %v198, %v242
        %vm250 = vcmp.ge.f32.partialorder %v199, %v242
        %v251 = vsel %vm243, %v192, 0.0
        %v252 = vsel %vm244, %v193, 0.0
        %v253 = vsel %vm245, %v194, 0.0
        %v254 = vsel %vm246, %v195, 0.0
        %v255 = vsel %vm247, %v196, 0.0
        %v256 = vsel %vm248, %v197, 0.0
        %v257 = vsel %vm249, %v198, 0.0
        %v258 = vsel %vm250, %v199, 0.0
        %259 = vst [vmem:[%s184] sm:$0xff] %v251
        %260 = vst [vmem:[%s184 + $0x8] sm:$0xff] %v252
        %261 = vst [vmem:[%s184 + $0x10] sm:$0xff] %v253
        %262 = vst [vmem:[%s184 + $0x18] sm:$0xff] %v254
        %263 = vst [vmem:[%s184 + $0x20] sm:$0xff] %v255
        %264 = vst [vmem:[%s184 + $0x28] sm:$0xff] %v256
        %265 = vst [vmem:[%s184 + $0x30] sm:$0xff] %v257
        %266 = vst [vmem:[%s184 + $0x38] sm:$0xff] %v258
        %v267 = vand.u32 2147483647, %v212
        %v268 = vadd.f32 %v267, 1e-12
        %v269 = vrcp.pop %v268
        %v270 = vmul.f32 %v269, 1e-09
        %v271 = vmul.f32 %v270, %v212
        %v272 = vmul.f32 %v270, %v192
        %v273 = vmul.f32 %v270, %v193
        %v274 = vmul.f32 %v270, %v194
        %v275 = vmul.f32 %v270, %v195
        %v276 = vmul.f32 %v270, %v196
        %v277 = vmul.f32 %v270, %v197
        %v278 = vmul.f32 %v270, %v198
        %v279 = vmul.f32 %v270, %v199
        %v280 = vsub.f32 %v271, %v272
        %v281 = vsub.f32 %v271, %v273
        %v282 = vsub.f32 %v271, %v274
        %v283 = vsub.f32 %v271, %v275
        %v284 = vsub.f32 %v271, %v276
        %v285 = vsub.f32 %v271, %v277
        %v286 = vsub.f32 %v271, %v278
        %v287 = vsub.f32 %v271, %v279
        %v288 = vsel %vm243, 0.0, %v280
        %v289 = vsel %vm244, 0.0, %v281
        %v290 = vsel %vm245, 0.0, %v282
        %v291 = vsel %vm246, 0.0, %v283
        %v292 = vsel %vm247, 0.0, %v284
        %v293 = vsel %vm248, 0.0, %v285
        %v294 = vsel %vm249, 0.0, %v286
        %v295 = vsel %vm250, 0.0, %v287
        %296 = vst [vmem:[%s191] sm:$0xff] %v288
        %297 = vst [vmem:[%s191 + $0x8] sm:$0xff] %v289
        %298 = vst [vmem:[%s191 + $0x10] sm:$0xff] %v290
        %299 = vst [vmem:[%s191 + $0x18] sm:$0xff] %v291
        %300 = vst [vmem:[%s191 + $0x20] sm:$0xff] %v292
        %301 = vst [vmem:[%s191 + $0x28] sm:$0xff] %v293
        %302 = vst [vmem:[%s191 + $0x30] sm:$0xff] %v294
        %303 = vst [vmem:[%s191 + $0x38] sm:$0xff] %v295
        %s304 = sand.u32 %s73, 1
        %s305 = scalar_lea.sflag [#allocation4], %s304
        %s306 = sand.u32 %s73, 1
        %s307 = smul.addr %s306, 64
        %s308 = scalar_lea.vmem [#allocation5], %s307
        %s309 = sand.u32 %s101, 1
        %s310 = scalar_lea.sflag [#allocation7], %s309
        %s311 = sand.u32 %s101, 1
        %s312 = smul.addr %s311, 64
        %s313 = scalar_lea.vmem [#allocation6], %s312
        // Predicated region
        $region29: #{tpu_custom_call.1} parent=23 // pred_check
          %p314 = pneg %p83
        $region30: #{tpu_custom_call.1} parent=23 // pred_check_branch
          %316 = sbr.rel (%p314) target = $region32
        $region31: #{tpu_custom_call.1} parent=23 // pred_region
          %s318 = ssub.s32 1024, 1024
          %319 = vsyncadd %s305, %s318
          %s320 = smul.addr %s27, 16
          %s321 = sadd.s32 %s28, %s320
          %s322 = smul.addr %s321, 128
          %s323 = scalar_lea.hbm %s1, %s322
          %s324 = sshll.u32 %s308, 4
          %s325 = int_to_ptr.vmem [resolvable:$true] %s324
          %330 = dma.vmem_to_hbm [thread:$0]  %s325, 1024, %s323, %s305, 128, 256, 8
        $region32: #{tpu_custom_call.1} parent=23 // pred_fallthru
          _
        // Predicated region
        $region33: #{tpu_custom_call.1} parent=23 // pred_check
          %p331 = pneg %p111
        $region34: #{tpu_custom_call.1} parent=23 // pred_check_branch
          %333 = sbr.rel (%p331) target = $region36
        $region35: #{tpu_custom_call.1} parent=23 // pred_region
          %s335 = ssub.s32 1024, 1024
          %336 = vsyncadd %s310, %s335
          %s337 = smul.addr %s27, 16
          %s338 = sadd.s32 %s28, %s337
          %s339 = smul.addr %s338, 128
          %s340 = scalar_lea.hbm %s2, %s339
          %s341 = sshll.u32 %s313, 4
          %s342 = int_to_ptr.vmem [resolvable:$true] %s341
          %347 = dma.vmem_to_hbm [thread:$0]  %s342, 1024, %s340, %s310, 128, 256, 8
        $region36: #{tpu_custom_call.1} parent=23 // pred_fallthru
          _
      $region24: #{tpu_custom_call.1} parent=5 // pred_fallthru
        _
      %p348 = scmp.le.s32.totalorder 2, %s18
      // Predicated region
      $region37: #{tpu_custom_call.1} parent=5 // pred_check
        %p349 = pneg %p348
      $region38: #{tpu_custom_call.1} parent=5 // pred_check_branch
        %351 = sbr.rel (%p349) target = $region40
      $region39: #{tpu_custom_call.1} parent=5 // pred_region
        %s352 = ssub.s32 %s18, 2
        // Predicated region
        $region41: #{tpu_custom_call.1} parent=39 // pred_check
          %p353 = pneg %p89
        $region42: #{tpu_custom_call.1} parent=39 // pred_check_branch
          %355 = sbr.rel (%p353) target = $region44
        $region43: #{tpu_custom_call.1} parent=39 // pred_region
          %s356 = sand.u32 %s74, 1
          %s357 = scalar_lea.sflag [#allocation4], %s356
          %s358 = sand.u32 %s74, 1
          %s359 = smul.addr %s358, 64
          %s360 = scalar_lea.vmem [#allocation5], %s359
          %361 = dma.done %s357, 1024
        $region44: #{tpu_custom_call.1} parent=39 // pred_fallthru
          _
        // Predicated region
        $region45: #{tpu_custom_call.1} parent=39 // pred_check
          %p362 = pneg %p117
        $region46: #{tpu_custom_call.1} parent=39 // pred_check_branch
          %364 = sbr.rel (%p362) target = $region48
        $region47: #{tpu_custom_call.1} parent=39 // pred_region
          %s365 = sand.u32 %s102, 1
          %s366 = scalar_lea.sflag [#allocation7], %s365
          %s367 = sand.u32 %s102, 1
          %s368 = smul.addr %s367, 64
          %s369 = scalar_lea.vmem [#allocation6], %s368
          %370 = dma.done %s366, 1024
        $region48: #{tpu_custom_call.1} parent=39 // pred_fallthru
          _
      $region40: #{tpu_custom_call.1} parent=5 // pred_fallthru
        _
    $region6: #{tpu_custom_call.1} parent=1 // loop_footer
      %s22 = sadd.s32 1, %s18
    $region7: #{tpu_custom_call.1} parent=1 // loop_footer_branch
      %17 = sbr.rel target = $region3
    $region8: #{tpu_custom_call.1} parent=1 // loop_exit
      _
    %371 = vsyncpa [#allocation3], 1
    %s372 = scalar_lea.sflag [#allocation3], 1
    %373 = vsyncpa %s372, 1
    %374 = vsyncpa [#allocation4], 1
    %s375 = scalar_lea.sflag [#allocation4], 1
    %376 = vsyncpa %s375, 1
    %377 = vsyncpa [#allocation7], 1
    %s378 = scalar_lea.sflag [#allocation7], 1
    %379 = vsyncpa %s378, 1

</llo_original>
